<compile_context>
chip_gen: v7x
topology: tpu7x:2x2x1
jax: 0.10.0
libtpu: 0.0.40
codegen_flags: <defaults>
</compile_context>

<pallas_src>
import functools

import jax
import jax.numpy as jnp
from jax import lax
from jax.experimental import pallas as pl
from jax.experimental.pallas import tpu as pltpu

EPS = 1e-5


# ----------------------------------------------------------------------------
# Shared in-kernel BatchNorm (training-mode, biased variance, two-pass).
# ----------------------------------------------------------------------------
def _bn_train(h, inv_n, gamma=None, beta=None):
    """BatchNorm1d with batch statistics on an (N, F) f32 block."""
    mu = jnp.sum(h, axis=0, keepdims=True) * inv_n
    hc = h - mu
    var = jnp.sum(hc * hc, axis=0, keepdims=True) * inv_n   # two-pass: no cancellation
    scale = lax.rsqrt(var + EPS)
    if gamma is not None:
        scale = scale * gamma
    y = hc * scale
    if beta is not None:
        y = y + beta
    return y


# ----------------------------------------------------------------------------
# Kernels
# ----------------------------------------------------------------------------
def _fused_mlp_kernel(x_ref, w1_ref, g1_ref, b1_ref, w3_ref, o_ref, *, inv_n):
    """layer1 (Linear->BN->ReLU) + layer3 (Linear->BN) fully fused in VMEM."""
    # layer1: bias-free Linear (bias cancels under batch-stat BN). In-kernel cast.
    h = jnp.dot(x_ref[...].astype(jnp.bfloat16), w1_ref[...],
                preferred_element_type=jnp.float32)
    h = _bn_train(h, inv_n, g1_ref[...], b1_ref[...])
    h = jnp.maximum(h, 0.0).astype(jnp.bfloat16)          # bf16: matmul-2 input
    # layer3: bias-free Linear -> BN(affine=False)
    z = jnp.dot(h, w3_ref[...], preferred_element_type=jnp.float32)
    o_ref[...] = _bn_train(z, inv_n).astype(o_ref.dtype)


def _linear_bn_kernel(x_ref, w_ref, g_ref, b_ref, o_ref, *, inv_n, relu):
    """Tiled fallback: Linear (full K) -> BN (full batch) [-> ReLU] per feature tile."""
    h = jnp.dot(x_ref[...], w_ref[...], preferred_element_type=jnp.float32)
    y = _bn_train(h, inv_n, g_ref[...], b_ref[...])
    if relu:
        y = jnp.maximum(y, 0.0)
    o_ref[...] = y.astype(o_ref.dtype)


# ----------------------------------------------------------------------------
# VMEM budgeting / tiling helpers
# ----------------------------------------------------------------------------
def _vmem_budget_bytes():
    """Generation-aware VMEM budget (~75% of physical capacity)."""
    try:
        cap = pltpu.get_tpu_info().vmem_capacity_bytes
    except Exception:
        cap = 64 * 1024 * 1024          # conservative default (v7x physical VMEM)
    return int(cap) * 3 // 4


def _fused_fits(n, in_dim, hid, out_dim, budget):
    est = (n * in_dim * 4               # x block (f32, read once)
           + in_dim * hid * 2           # w1 (bf16)
           + hid * out_dim * 2          # w3 (bf16)
           + n * hid * 4                # h (f32 live value)
           + n * hid * 2                # h (bf16 matmul-2 input)
           + n * out_dim * 4            # z (f32)
           + n * out_dim * 4            # output block (f32)
           + 8 * (hid + out_dim) * 4)   # BN vectors / misc
    return est <= budget * 0.6          # headroom for compiler temporaries


def _pick_feature_tile(fdim, target, block_fits):
    """Largest 128-aligned divisor of fdim that fits VMEM, preferring >=2 tiles
    (keeps both v7x TensorCores busy on the 'parallel' feature axis)."""
    if fdim <= 128 or fdim % 128 != 0:
        return fdim                     # ragged / tiny: single full-width tile
    divisors = [t for t in range(fdim, 127, -128) if fdim % t == 0]
    for pred in (lambda t: block_fits(t) and t <= target and fdim // t >= 2,
                 lambda t: block_fits(t) and t <= target,
                 lambda t: block_fits(t)):
        for t in divisors:              # largest first
            if pred(t):
                return t
    return 128                          # caller's guard raises if even this is too big


# ----------------------------------------------------------------------------
# Wrappers
# ----------------------------------------------------------------------------
def _fused_forward(x, w1_bf, g1, beta1, w3_bf, budget):
    n = x.shape[0]
    out_dim = w3_bf.shape[1]
    kernel = functools.partial(_fused_mlp_kernel, inv_n=1.0 / float(n))
    vmem = pl.BlockSpec(memory_space=pltpu.MemorySpace.VMEM)
    return pl.pallas_call(
        kernel,
        out_shape=jax.ShapeDtypeStruct((n, out_dim), jnp.float32),
        in_specs=[vmem] * 5,
        out_specs=vmem,
        compiler_params=pltpu.CompilerParams(vmem_limit_bytes=budget),
    )(x, w1_bf, g1, beta1, w3_bf)


def _tiled_linear_bn(x, w, gamma, beta, *, relu, out_dtype, budget, tn_target=512):
    """y = BN(x @ w) * gamma + beta [-> ReLU], grid over output-feature tiles only.

    Full batch and full contraction dim per tile -> exact BN statistics, no
    accumulator, no pl.when phases.
    """
    n, kdim = x.shape
    fdim = w.shape[1]
    out_isz = jnp.dtype(out_dtype).itemsize

    def block_fits(tn):
        blk = (n * kdim * x.dtype.itemsize    # x block (same block every step)
               + kdim * tn * w.dtype.itemsize
               + n * tn * out_isz
               + 2 * tn * 4)                  # gamma/beta tiles
        return 2 * blk + n * tn * 4 <= budget  # 2x double-buffer + f32 h

    tn = _pick_feature_tile(fdim, tn_target, block_fits)
    if not block_fits(tn):
        # TODO(synk): add a two-phase batch-tiled BN-statistics path for huge N.
        raise ValueError(
            "projection_MLP: full-batch blocks do not fit VMEM "
            f"(N={n}, K={kdim}, tile={tn}, budget={budget >> 20} MiB). "
            "BatchNorm needs full-batch statistics; reduce the batch size.")

    grid = (fdim // tn,)
    kernel = functools.partial(_linear_bn_kernel, inv_n=1.0 / float(n), relu=relu)
    return pl.pallas_call(
        kernel,
        out_shape=jax.ShapeDtypeStruct((n, fdim), out_dtype),
        grid_spec=pltpu.PrefetchScalarGridSpec(
            num_scalar_prefetch=0,
            grid=grid,
            in_specs=[pl.BlockSpec((n, kdim), lambda j: (0, 0)),
                      pl.BlockSpec((kdim, tn), lambda j: (0, j)),
                      pl.BlockSpec((1, tn), lambda j: (0, j)),
                      pl.BlockSpec((1, tn), lambda j: (0, j))],
            out_specs=pl.BlockSpec((n, tn), lambda j: (0, j)),
        ),
        compiler_params=pltpu.CompilerParams(
            dimension_semantics=("parallel",),
            vmem_limit_bytes=budget,
        ),
    )(x, w, gamma, beta)


def prepare_params(params):
    """One-time prep: persist bf16 weights; drop Linear biases (they cancel
    exactly under training-mode batch-statistics BatchNorm)."""
    w1, b1, g1, beta1, w3, b3 = params
    del b1, b3
    return (w1.astype(jnp.bfloat16), g1, beta1, w3.astype(jnp.bfloat16))


def projection_mlp(x, prepared_params, *, force_tiled=False):
    """x: (N, in_dim) float32 -> (N, out_dim) float32."""
    w1_bf, g1, beta1, w3_bf = prepared_params
    n, in_dim = x.shape
    hid = w1_bf.shape[1]
    out_dim = w3_bf.shape[1]
    budget = _vmem_budget_bytes()

    if not force_tiled and _fused_fits(n, in_dim, hid, out_dim, budget):
        # Single launch, h stays in VMEM, x cast in-kernel.
        return _fused_forward(x, w1_bf, g1, beta1, w3_bf, budget)

    # Tiled fallback: x is re-read once per feature tile -> cast once up front.
    x_bf = x.astype(jnp.bfloat16)
    h = _tiled_linear_bn(x_bf, w1_bf, g1, beta1, relu=True,
                         out_dtype=jnp.bfloat16, budget=budget)
    ones = jnp.ones((1, out_dim), jnp.float32)
    zeros = jnp.zeros((1, out_dim), jnp.float32)
    return _tiled_linear_bn(h, w3_bf, ones, zeros, relu=False,
                            out_dtype=jnp.float32, budget=budget)


# ----------------------------------------------------------------------------
# Params / reference / test
# ----------------------------------------------------------------------------
def init_params(key, in_dim, out_dim):
    hidden = out_dim
    k1, k2, k3, k4 = jax.random.split(key, 4)
    w1 = jax.random.normal(k1, (in_dim, hidden), jnp.float32) * 0.05   # Linear1 weight^T
    b1 = jax.random.normal(k2, (1, hidden), jnp.float32) * 0.05        # Linear1 bias
    g1 = jnp.ones((1, hidden), jnp.float32)                            # BN1 gamma
    beta1 = jnp.zeros((1, hidden), jnp.float32)                        # BN1 beta
    w3 = jax.random.normal(k3, (hidden, out_dim), jnp.float32) * 0.05  # Linear3 weight^T
    b3 = jax.random.normal(k4, (1, out_dim), jnp.float32) * 0.05       # Linear3 bias
    return w1, b1, g1, beta1, w3, b3


def reference(x, params):
    """Pure-JAX f32 reference matching the PyTorch module (biases included)."""
    w1, b1, g1, beta1, w3, b3 = params
    h = x @ w1 + b1
    h = (h - h.mean(0, keepdims=True)) / jnp.sqrt(h.var(0, keepdims=True) + EPS)
    h = jnp.maximum(h * g1 + beta1, 0.0)
    y = h @ w3 + b3
    return (y - y.mean(0, keepdims=True)) / jnp.sqrt(y.var(0, keepdims=True) + EPS)


if __name__ == "__main__":
    key = jax.random.PRNGKey(0)
    kx, kp = jax.random.split(key)

    # Small but lane/sublane-friendly shapes (hidden_dim == out_dim in the module).
    batch, in_dim, out_dim = 64, 256, 128
    x = jax.random.normal(kx, (batch, in_dim), jnp.float32)
    params = init_params(kp, in_dim, out_dim)
    prepared = prepare_params(params)   # bf16 weights persisted once

    # Fused single-launch path.
    out = jax.block_until_ready(projection_mlp(x, prepared))
    ref = reference(x, params)
    assert out.shape == (batch, out_dim)
    # bf16 MXU inputs -> loosened tolerance vs. the f32 reference.
    assert jnp.allclose(out, ref, atol=5e-2, rtol=5e-2), \
        float(jnp.max(jnp.abs(out - ref)))

    # Also exercise the tiled fallback path (2 feature tiles on the grid).
    b2, i2, o2 = 64, 256, 256
    x2 = jax.random.normal(kx, (b2, i2), jnp.float32)
    params2 = init_params(kp, i2, o2)
    out2 = jax.block_until_ready(
        projection_mlp(x2, prepare_params(params2), force_tiled=True))
    ref2 = reference(x2, params2)
    assert out2.shape == (b2, o2)
    assert jnp.allclose(out2, ref2, atol=5e-2, rtol=5e-2), \
        float(jnp.max(jnp.abs(out2 - ref2)))

    print("KERNEL_OK")
</pallas_src>

<mosaic_0001>
module attributes {stable_mosaic.version = 11 : i64} {
  func.func @_fused_mlp_kernel(%arg0: memref<64x256xf32, #tpu.memory_space<vmem>>, %arg1: memref<256x128xbf16, #tpu.memory_space<vmem>>, %arg2: memref<1x128xf32, #tpu.memory_space<vmem>>, %arg3: memref<1x128xf32, #tpu.memory_space<vmem>>, %arg4: memref<128x128xbf16, #tpu.memory_space<vmem>>, %arg5: memref<64x128xf32, #tpu.memory_space<vmem>>) attributes {dimension_semantics = [], scalar_prefetch = 0 : i64, scratch_operands = 0 : i64, tpu.core_type = #tpu.core_type<tc>} {
    %c0 = arith.constant 0 : index
    %c0_0 = arith.constant 0 : index
    %0 = vector.load %arg0[%c0, %c0_0] : memref<64x256xf32, #tpu.memory_space<vmem>>, vector<64x256xf32>
    %1 = arith.truncf %0 : vector<64x256xf32> to vector<64x256xbf16>
    %c0_1 = arith.constant 0 : index
    %c0_2 = arith.constant 0 : index
    %2 = vector.load %arg1[%c0_1, %c0_2] : memref<256x128xbf16, #tpu.memory_space<vmem>>, vector<256x128xbf16>
    %cst = arith.constant dense<0.000000e+00> : vector<64x128xf32>
    %3 = tpu.matmul %1, %2, %cst {dimension_numbers = #tpu.dot_dimension_numbers<[1], [0], [0], [1], [0, 0, 1, 1], [], []>} : vector<64x256xbf16>, vector<256x128xbf16>, vector<64x128xf32> -> vector<64x128xf32>
    %c0_3 = arith.constant 0 : index
    %c0_4 = arith.constant 0 : index
    %4 = vector.load %arg2[%c0_3, %c0_4] : memref<1x128xf32, #tpu.memory_space<vmem>>, vector<1x128xf32>
    %c0_5 = arith.constant 0 : index
    %c0_6 = arith.constant 0 : index
    %5 = vector.load %arg3[%c0_5, %c0_6] : memref<1x128xf32, #tpu.memory_space<vmem>>, vector<1x128xf32>
    %cst_7 = arith.constant dense<0.000000e+00> : vector<128xf32>
    %6 = vector.multi_reduction <add>, %3, %cst_7 [0] : vector<64x128xf32> to vector<128xf32>
    %7 = vector.shape_cast %6 : vector<128xf32> to vector<1x128xf32>
    %cst_8 = arith.constant 1.562500e-02 : f32
    %8 = vector.broadcast %cst_8 : f32 to vector<1x128xf32>
    %9 = arith.mulf %7, %8 : vector<1x128xf32>
    %10 = vector.broadcast %9 : vector<1x128xf32> to vector<64x128xf32>
    %11 = arith.subf %3, %10 : vector<64x128xf32>
    %12 = arith.mulf %11, %11 : vector<64x128xf32>
    %cst_9 = arith.constant dense<0.000000e+00> : vector<128xf32>
    %13 = vector.multi_reduction <add>, %12, %cst_9 [0] : vector<64x128xf32> to vector<128xf32>
    %14 = vector.shape_cast %13 : vector<128xf32> to vector<1x128xf32>
    %cst_10 = arith.constant 1.562500e-02 : f32
    %15 = vector.broadcast %cst_10 : f32 to vector<1x128xf32>
    %16 = arith.mulf %14, %15 : vector<1x128xf32>
    %cst_11 = arith.constant 9.99999974E-6 : f32
    %17 = vector.broadcast %cst_11 : f32 to vector<1x128xf32>
    %18 = arith.addf %16, %17 : vector<1x128xf32>
    %19 = math.rsqrt %18 : vector<1x128xf32>
    %20 = arith.mulf %19, %4 : vector<1x128xf32>
    %21 = vector.broadcast %20 : vector<1x128xf32> to vector<64x128xf32>
    %22 = arith.mulf %11, %21 : vector<64x128xf32>
    %23 = vector.broadcast %5 : vector<1x128xf32> to vector<64x128xf32>
    %24 = arith.addf %22, %23 : vector<64x128xf32>
    %cst_12 = arith.constant 0.000000e+00 : f32
    %25 = vector.broadcast %cst_12 : f32 to vector<64x128xf32>
    %26 = arith.maximumf %24, %25 : vector<64x128xf32>
    %27 = arith.truncf %26 : vector<64x128xf32> to vector<64x128xbf16>
    %c0_13 = arith.constant 0 : index
    %c0_14 = arith.constant 0 : index
    %28 = vector.load %arg4[%c0_13, %c0_14] : memref<128x128xbf16, #tpu.memory_space<vmem>>, vector<128x128xbf16>
    %cst_15 = arith.constant dense<0.000000e+00> : vector<64x128xf32>
    %29 = tpu.matmul %27, %28, %cst_15 {dimension_numbers = #tpu.dot_dimension_numbers<[1], [0], [0], [1], [0, 0, 1, 1], [], []>} : vector<64x128xbf16>, vector<128x128xbf16>, vector<64x128xf32> -> vector<64x128xf32>
    %cst_16 = arith.constant dense<0.000000e+00> : vector<128xf32>
    %30 = vector.multi_reduction <add>, %29, %cst_16 [0] : vector<64x128xf32> to vector<128xf32>
    %31 = vector.shape_cast %30 : vector<128xf32> to vector<1x128xf32>
    %cst_17 = arith.constant 1.562500e-02 : f32
    %32 = vector.broadcast %cst_17 : f32 to vector<1x128xf32>
    %33 = arith.mulf %31, %32 : vector<1x128xf32>
    %34 = vector.broadcast %33 : vector<1x128xf32> to vector<64x128xf32>
    %35 = arith.subf %29, %34 : vector<64x128xf32>
    %36 = arith.mulf %35, %35 : vector<64x128xf32>
    %cst_18 = arith.constant dense<0.000000e+00> : vector<128xf32>
    %37 = vector.multi_reduction <add>, %36, %cst_18 [0] : vector<64x128xf32> to vector<128xf32>
    %38 = vector.shape_cast %37 : vector<128xf32> to vector<1x128xf32>
    %cst_19 = arith.constant 1.562500e-02 : f32
    %39 = vector.broadcast %cst_19 : f32 to vector<1x128xf32>
    %40 = arith.mulf %38, %39 : vector<1x128xf32>
    %cst_20 = arith.constant 9.99999974E-6 : f32
    %41 = vector.broadcast %cst_20 : f32 to vector<1x128xf32>
    %42 = arith.addf %40, %41 : vector<1x128xf32>
    %43 = math.rsqrt %42 : vector<1x128xf32>
    %44 = vector.broadcast %43 : vector<1x128xf32> to vector<64x128xf32>
    %45 = arith.mulf %35, %44 : vector<64x128xf32>
    %c0_21 = arith.constant 0 : index
    %c0_22 = arith.constant 0 : index
    %46 = vector.load %arg5[%c0_21, %c0_22] : memref<64x128xf32, #tpu.memory_space<vmem>>, vector<64x128xf32>
    tpu.vector_store %arg5[%c0_21, %c0_22], %45 {strides = array<i32>} : memref<64x128xf32, #tpu.memory_space<vmem>>, vector<64x128xf32>,
    return
  }
}

</mosaic_0001>

<llo_original>
// kernel: tpu_custom_call.1
$region0: #{tpu_custom_call.1}
  #allocation0 [shape = 'u32[]', space=smem, size = 0x4, offset = 0x4, fixed_abs, tag = 'smem constant byte address 0x4 - core index']
  #allocation1 [shape = 'u32[144,128]{1,0:T(1,128)}', space=vmem, size = 0x12000, scoped, tag = 'internal scratch']
  %s0 = inlined_call_operand.hbm [shape: f32[64,256], index: 0, kind: input, shape index: {}]
  %s1 = inlined_call_operand.hbm [shape: bf16[256,128], index: 1, kind: input, shape index: {}]
  %s2 = inlined_call_operand.vmem [shape: f32[1,128], index: 2, kind: input, shape index: {}]
  %s3 = inlined_call_operand.vmem [shape: f32[1,128], index: 3, kind: input, shape index: {}]
  %s4 = inlined_call_operand.hbm [shape: bf16[128,128], index: 4, kind: input, shape index: {}]
  %s5 = inlined_call_operand.hbm [shape: f32[64,128], index: 5, kind: output, shape index: {}]
  %s6 = sld [smem:[#allocation0]]
  $region42: #{tpu_custom_call.1} parent=0
    _
  %s8 = ssub.s32 1, %s6
  %s9 = scalar_select 0, %s8, %s6
  $region1: #{tpu_custom_call.1} parent=0
    #allocation2 [shape = 'u8[65536]{0}', space=vmem, size = 0x10000, scoped, tag = 'input window, operand 0, single buffered']
    #allocation3 [shape = 's32[1]{0}', space=sflag, size = 0x4, scoped, tag = 'scoped memory for tpu_custom_call.1']
    #allocation4 [shape = 's32[1]{0}', space=sflag, size = 0x4, scoped, tag = 'scoped memory for tpu_custom_call.1']
    #allocation5 [shape = 'u8[65536]{0}', space=vmem, size = 0x10000, scoped, tag = 'input window, operand 1, single buffered']
    #allocation6 [shape = 's32[1]{0}', space=sflag, size = 0x4, scoped, tag = 'scoped memory for tpu_custom_call.1']
    #allocation7 [shape = 'u8[32768]{0}', space=vmem, size = 0x8000, scoped, tag = 'input window, operand 4, single buffered']
    #allocation8 [shape = 'u8[32768]{0}', space=vmem, size = 0x8000, scoped, tag = 'output window, operand 0, single buffered']
    %10 = vsyncpa [#allocation3], 0
    %11 = vsyncpa [#allocation6], 0
    %12 = vsyncpa [#allocation4], 0
    // Predicated region
    $region2: #{tpu_custom_call.1} parent=1 // pred_check
      _
    $region3: #{tpu_custom_call.1} parent=1 // pred_check_branch
      %14 = sbr.rel (0) target = $region5
    $region4: #{tpu_custom_call.1} parent=1 // pred_region
      %s16 = ssub.s32 2048, 2048
      %17 = vsyncadd [#allocation3], %s16
      %s18 = sshll.u32 [#allocation2], 4
      %s19 = int_to_ptr.vmem [resolvable:$true] %s18
      %24 = dma.hbm_to_vmem [thread:$0]  %s0, 2048, %s19, [#allocation3], 256, 256, 16
    $region5: #{tpu_custom_call.1} parent=1 // pred_fallthru
      _
    // Predicated region
    $region6: #{tpu_custom_call.1} parent=1 // pred_check
      _
    $region7: #{tpu_custom_call.1} parent=1 // pred_check_branch
      %26 = sbr.rel (0) target = $region9
    $region8: #{tpu_custom_call.1} parent=1 // pred_region
      %s28 = ssub.s32 2048, 2048
      %29 = vsyncadd [#allocation6], %s28
      %s30 = sshll.u32 [#allocation5], 4
      %s31 = int_to_ptr.vmem [resolvable:$true] %s30
      %36 = dma.hbm_to_vmem [thread:$0]  %s1, 2048, %s31, [#allocation6], 64, 64, 4
    $region9: #{tpu_custom_call.1} parent=1 // pred_fallthru
      _
    // Predicated region
    $region10: #{tpu_custom_call.1} parent=1 // pred_check
      _
    $region11: #{tpu_custom_call.1} parent=1 // pred_check_branch
      %38 = sbr.rel (0) target = $region13
    $region12: #{tpu_custom_call.1} parent=1 // pred_region
      _
    $region13: #{tpu_custom_call.1} parent=1 // pred_fallthru
      _
    // Predicated region
    $region14: #{tpu_custom_call.1} parent=1 // pred_check
      _
    $region15: #{tpu_custom_call.1} parent=1 // pred_check_branch
      %40 = sbr.rel (0) target = $region17
    $region16: #{tpu_custom_call.1} parent=1 // pred_region
      _
    $region17: #{tpu_custom_call.1} parent=1 // pred_fallthru
      _
    // Predicated region
    $region18: #{tpu_custom_call.1} parent=1 // pred_check
      _
    $region19: #{tpu_custom_call.1} parent=1 // pred_check_branch
      %42 = sbr.rel (0) target = $region21
    $region20: #{tpu_custom_call.1} parent=1 // pred_region
      %s44 = ssub.s32 1024, 1024
      %45 = vsyncadd [#allocation6], %s44
      %s46 = sshll.u32 [#allocation7], 4
      %s47 = int_to_ptr.vmem [resolvable:$true] %s46
      %52 = dma.hbm_to_vmem [thread:$0]  %s4, 1024, %s47, [#allocation6], 64, 64, 4
    $region21: #{tpu_custom_call.1} parent=1 // pred_fallthru
      _
    // Predicated region
    $region22: #{tpu_custom_call.1} parent=1 // pred_check
      _
    $region23: #{tpu_custom_call.1} parent=1 // pred_check_branch
      %54 = sbr.rel (0) target = $region25
    $region24: #{tpu_custom_call.1} parent=1 // pred_region
      %55 = dma.done [#allocation3], 2048
    $region25: #{tpu_custom_call.1} parent=1 // pred_fallthru
      _
    // Predicated region
    $region26: #{tpu_custom_call.1} parent=1 // pred_check
      _
    $region27: #{tpu_custom_call.1} parent=1 // pred_check_branch
      %57 = sbr.rel (0) target = $region29
    $region28: #{tpu_custom_call.1} parent=1 // pred_region
      %58 = dma.done [#allocation6], 2048
    $region29: #{tpu_custom_call.1} parent=1 // pred_fallthru
      _
    // Predicated region
    $region30: #{tpu_custom_call.1} parent=1 // pred_check
      _
    $region31: #{tpu_custom_call.1} parent=1 // pred_check_branch
      %60 = sbr.rel (0) target = $region33
    $region32: #{tpu_custom_call.1} parent=1 // pred_region
      %61 = dma.done [#allocation6], 1024
    $region33: #{tpu_custom_call.1} parent=1 // pred_fallthru
      _
    %v63 = vld [vmem:[#allocation2] sm:$0xff]
    %v64 = vld [vmem:[#allocation2 + $0x8] sm:$0xff]
    %v65 = vld [vmem:[#allocation2 + $0x10] sm:$0xff]
    %v66 = vld [vmem:[#allocation2 + $0x18] sm:$0xff]
    %v67 = vld [vmem:[#allocation2 + $0x20] sm:$0xff]
    %v68 = vld [vmem:[#allocation2 + $0x28] sm:$0xff]
    %v69 = vld [vmem:[#allocation2 + $0x30] sm:$0xff]
    %v70 = vld [vmem:[#allocation2 + $0x38] sm:$0xff]
    %v71 = vld [vmem:[#allocation2 + $0x40] sm:$0xff]
    %v72 = vld [vmem:[#allocation2 + $0x48] sm:$0xff]
    %v73 = vld [vmem:[#allocation2 + $0x50] sm:$0xff]
    %v74 = vld [vmem:[#allocation2 + $0x58] sm:$0xff]
    %v75 = vld [vmem:[#allocation2 + $0x60] sm:$0xff]
    %v76 = vld [vmem:[#allocation2 + $0x68] sm:$0xff]
    %v77 = vld [vmem:[#allocation2 + $0x70] sm:$0xff]
    %v78 = vld [vmem:[#allocation2 + $0x78] sm:$0xff]
    %v79 = vpack.c.bf16 %v65, %v63
    %v80 = vpack.c.bf16 %v66, %v64
    %v81 = vpack.c.bf16 %v69, %v67
    %v82 = vpack.c.bf16 %v70, %v68
    %v83 = vpack.c.bf16 %v73, %v71
    %v84 = vpack.c.bf16 %v74, %v72
    %v85 = vpack.c.bf16 %v77, %v75
    %v86 = vpack.c.bf16 %v78, %v76
    %v87 = vld [vmem:[#allocation5] sm:$0xf]
    %v88 = vld [vmem:[#allocation5 + $0x4] sm:$0xf]
    %v89 = vld [vmem:[#allocation5 + $0x8] sm:$0xf]
    %v90 = vld [vmem:[#allocation5 + $0xc] sm:$0xf]
    %v91 = vld [vmem:[#allocation5 + $0x10] sm:$0xf]
    %v92 = vld [vmem:[#allocation5 + $0x14] sm:$0xf]
    %v93 = vld [vmem:[#allocation5 + $0x18] sm:$0xf]
    %v94 = vld [vmem:[#allocation5 + $0x1c] sm:$0xf]
    %v95 = vld [vmem:[#allocation5 + $0x20] sm:$0xf]
    %v96 = vld [vmem:[#allocation5 + $0x24] sm:$0xf]
    %v97 = vld [vmem:[#allocation5 + $0x28] sm:$0xf]
    %v98 = vld [vmem:[#allocation5 + $0x2c] sm:$0xf]
    %v99 = vld [vmem:[#allocation5 + $0x30] sm:$0xf]
    %v100 = vld [vmem:[#allocation5 + $0x34] sm:$0xf]
    %v101 = vld [vmem:[#allocation5 + $0x38] sm:$0xf]
    %v102 = vld [vmem:[#allocation5 + $0x3c] sm:$0xf]
    %v103 = vld [vmem:[#allocation5 + $0x40] sm:$0xf]
    %v104 = vld [vmem:[#allocation5 + $0x44] sm:$0xf]
    %v105 = vld [vmem:[#allocation5 + $0x48] sm:$0xf]
    %v106 = vld [vmem:[#allocation5 + $0x4c] sm:$0xf]
    %v107 = vld [vmem:[#allocation5 + $0x50] sm:$0xf]
    %v108 = vld [vmem:[#allocation5 + $0x54] sm:$0xf]
    %v109 = vld [vmem:[#allocation5 + $0x58] sm:$0xf]
    %v110 = vld [vmem:[#allocation5 + $0x5c] sm:$0xf]
    %v111 = vld [vmem:[#allocation5 + $0x60] sm:$0xf]
    %v112 = vld [vmem:[#allocation5 + $0x64] sm:$0xf]
    %v113 = vld [vmem:[#allocation5 + $0x68] sm:$0xf]
    %v114 = vld [vmem:[#allocation5 + $0x6c] sm:$0xf]
    %v115 = vld [vmem:[#allocation5 + $0x70] sm:$0xf]
    %v116 = vld [vmem:[#allocation5 + $0x74] sm:$0xf]
    %v117 = vld [vmem:[#allocation5 + $0x78] sm:$0xf]
    %v118 = vld [vmem:[#allocation5 + $0x7c] sm:$0xf]
    %v151 = vunpack.c.l.b16 %v87
    %v152 = vunpack.c.l.b16 %v88
    %v153 = vunpack.c.l.b16 %v89
    %v154 = vunpack.c.l.b16 %v90
    %v155 = vunpack.c.l.b16 %v91
    %v156 = vunpack.c.l.b16 %v92
    %v157 = vunpack.c.l.b16 %v93
    %v158 = vunpack.c.l.b16 %v94
    %v159 = vunpack.c.l.b16 %v95
    %v160 = vunpack.c.l.b16 %v96
    %v161 = vunpack.c.l.b16 %v97
    %v162 = vunpack.c.l.b16 %v98
    %v163 = vunpack.c.l.b16 %v99
    %v164 = vunpack.c.l.b16 %v100
    %v165 = vunpack.c.l.b16 %v101
    %v166 = vunpack.c.l.b16 %v102
    %v167 = vunpack.c.l.b16 %v103
    %v168 = vunpack.c.l.b16 %v104
    %v169 = vunpack.c.l.b16 %v105
    %v170 = vunpack.c.l.b16 %v106
    %v171 = vunpack.c.l.b16 %v107
    %v172 = vunpack.c.l.b16 %v108
    %v173 = vunpack.c.l.b16 %v109
    %v174 = vunpack.c.l.b16 %v110
    %v175 = vunpack.c.l.b16 %v111
    %v176 = vunpack.c.l.b16 %v112
    %v177 = vunpack.c.l.b16 %v113
    %v178 = vunpack.c.l.b16 %v114
    %v179 = vunpack.c.l.b16 %v115
    %v180 = vunpack.c.l.b16 %v116
    %v181 = vunpack.c.l.b16 %v117
    %v182 = vunpack.c.l.b16 %v118
    %v183 = vpack.c.b16 %v152, %v151
    %v184 = vpack.c.b16 %v154, %v153
    %v185 = vpack.c.b16 %v156, %v155
    %v186 = vpack.c.b16 %v158, %v157
    %v187 = vpack.c.b16 %v160, %v159
    %v188 = vpack.c.b16 %v162, %v161
    %v189 = vpack.c.b16 %v164, %v163
    %v190 = vpack.c.b16 %v166, %v165
    %v191 = vpack.c.b16 %v168, %v167
    %v192 = vpack.c.b16 %v170, %v169
    %v193 = vpack.c.b16 %v172, %v171
    %v194 = vpack.c.b16 %v174, %v173
    %v195 = vpack.c.b16 %v176, %v175
    %v196 = vpack.c.b16 %v178, %v177
    %v197 = vpack.c.b16 %v180, %v179
    %v198 = vpack.c.b16 %v182, %v181
    %215 = vmatprep.subr.bf16.mxu0 0
    %216 = vmatpush1.bf16.msra.mxu0 %v183
    %217 = vmatprep.subr.bf16.mxu0 0
    %218 = vmatpush1.bf16.msra.mxu0 %v184
    %219 = vmatprep.subr.bf16.mxu0 0
    %220 = vmatpush1.bf16.msra.mxu0 %v185
    %221 = vmatprep.subr.bf16.mxu0 0
    %222 = vmatpush1.bf16.msra.mxu0 %v186
    %223 = vmatprep.subr.bf16.mxu0 0
    %224 = vmatpush1.bf16.msra.mxu0 %v187
    %225 = vmatprep.subr.bf16.mxu0 0
    %226 = vmatpush1.bf16.msra.mxu0 %v188
    %227 = vmatprep.subr.bf16.mxu0 0
    %228 = vmatpush1.bf16.msra.mxu0 %v189
    %229 = vmatprep.subr.bf16.mxu0 0
    %230 = vmatpush1.bf16.msra.mxu0 %v190
    %231 = vmatprep.subr.bf16.mxu0 0
    %232 = vmatpush1.bf16.msra.mxu0 %v191
    %233 = vmatprep.subr.bf16.mxu0 0
    %234 = vmatpush1.bf16.msra.mxu0 %v192
    %235 = vmatprep.subr.bf16.mxu0 0
    %236 = vmatpush1.bf16.msra.mxu0 %v193
    %237 = vmatprep.subr.bf16.mxu0 0
    %238 = vmatpush1.bf16.msra.mxu0 %v194
    %239 = vmatprep.subr.bf16.mxu0 0
    %240 = vmatpush1.bf16.msra.mxu0 %v195
    %241 = vmatprep.subr.bf16.mxu0 0
    %242 = vmatpush1.bf16.msra.mxu0 %v196
    %243 = vmatprep.subr.bf16.mxu0 0
    %244 = vmatpush1.bf16.msra.mxu0 %v197
    %245 = vmatprep.subr.bf16.mxu0 0
    %246 = vmatpush1.bf16.msra.mxu0 %v198
    %247 = vmatprep.mubr.bf16.mxu0 %v80
    %248 = vmatmul.mubr.bf16.gmra.mrb[0].mxu0 %v79
    %v249 = vpop.f32.mrb[0].mxu0
    %v250 = vadd.f32 0.0, %v249
    %v251 = vpop.f32.mrb[0].mxu0
    %v252 = vpop.f32.mrb[0].mxu0
    %v253 = vadd.f32 0.0, %v252
    %v254 = vpop.f32.mrb[0].mxu0
    %255 = vmatprep.mubr.bf16.mxu0 %v82
    %256 = vmatmul.mubr.bf16.gmra.mrb[0].mxu0 %v81
    %v257 = vpop.f32.mrb[0].mxu0
    %v258 = vadd.f32 0.0, %v257
    %v259 = vpop.f32.mrb[0].mxu0
    %v260 = vpop.f32.mrb[0].mxu0
    %v261 = vadd.f32 0.0, %v260
    %v262 = vpop.f32.mrb[0].mxu0
    %263 = vmatprep.mubr.bf16.mxu0 %v84
    %264 = vmatmul.mubr.bf16.gmra.mrb[0].mxu0 %v83
    %v265 = vpop.f32.mrb[0].mxu0
    %v266 = vadd.f32 0.0, %v265
    %v267 = vpop.f32.mrb[0].mxu0
    %v268 = vpop.f32.mrb[0].mxu0
    %v269 = vadd.f32 0.0, %v268
    %v270 = vpop.f32.mrb[0].mxu0
    %271 = vmatprep.mubr.bf16.mxu0 %v86
    %272 = vmatmul.mubr.bf16.gmra.mrb[0].mxu0 %v85
    %v273 = vpop.f32.mrb[0].mxu0
    %v274 = vadd.f32 0.0, %v273
    %v275 = vpop.f32.mrb[0].mxu0
    %v276 = vpop.f32.mrb[0].mxu0
    %v277 = vadd.f32 0.0, %v276
    %v278 = vpop.f32.mrb[0].mxu0
    %279 = vdwg.mxu0
    %v280 = vld [vmem:[%s2] sm:$0x1]
    %v281 = vld [vmem:[%s3] sm:$0x1]
    %v282 = vadd.f32 %v250, %v253
    %v283 = vadd.f32 %v282, %v258
    %v284 = vadd.f32 %v283, %v261
    %v285 = vadd.f32 %v284, %v266
    %v286 = vadd.f32 %v285, %v269
    %v287 = vadd.f32 %v286, %v274
    %v288 = vadd.f32 %v287, %v277
    %v289 = vrot.slane %v288, 4
    %v290 = vadd.f32 %v288, %v289
    %v291 = vrot.slane %v290, 2
    %v292 = vadd.f32 %v290, %v291
    %v293 = vrot.slane %v292, 1
    %v294 = vadd.f32 %v292, %v293
    %v295 = vmul.f32 %v294, 0.015625
    %v296 = vsub.f32 %v250, %v295
    %v297 = vsub.f32 %v253, %v295
    %v298 = vsub.f32 %v258, %v295
    %v299 = vsub.f32 %v261, %v295
    %v300 = vsub.f32 %v266, %v295
    %v301 = vsub.f32 %v269, %v295
    %v302 = vsub.f32 %v274, %v295
    %v303 = vsub.f32 %v277, %v295
    %v304 = vmul.f32 %v296, %v296
    %v305 = vmul.f32 %v297, %v297
    %v306 = vmul.f32 %v298, %v298
    %v307 = vmul.f32 %v299, %v299
    %v308 = vmul.f32 %v300, %v300
    %v309 = vmul.f32 %v301, %v301
    %v310 = vmul.f32 %v302, %v302
    %v311 = vmul.f32 %v303, %v303
    %v312 = vadd.f32 %v304, %v305
    %v313 = vadd.f32 %v312, %v306
    %v314 = vadd.f32 %v313, %v307
    %v315 = vadd.f32 %v314, %v308
    %v316 = vadd.f32 %v315, %v309
    %v317 = vadd.f32 %v316, %v310
    %v318 = vadd.f32 %v317, %v311
    %v319 = vrot.slane %v318, 4
    %v320 = vadd.f32 %v318, %v319
    %v321 = vrot.slane %v320, 2
    %v322 = vadd.f32 %v320, %v321
    %v323 = vrot.slane %v322, 1
    %v324 = vadd.f32 %v322, %v323
    %v325 = vmul.f32 %v324, 0.015625
    %v326 = vadd.f32 %v325, 1e-05
    %v327 = vrsqrt.pop %v326
    %v328 = vmul.f32 %v327, %v280
    %v329 = vlaneseq
    %v330 = vshrl.u32 %v329, 7
    %v331 = vsub.s32 0, %v330
    %v332 = vrot.slane %v328, %v331
    %v333 = vmul.f32 %v296, %v332
    %v334 = vmul.f32 %v297, %v332
    %v335 = vmul.f32 %v298, %v332
    %v336 = vmul.f32 %v299, %v332
    %v337 = vmul.f32 %v300, %v332
    %v338 = vmul.f32 %v301, %v332
    %v339 = vmul.f32 %v302, %v332
    %v340 = vmul.f32 %v303, %v332
    %v342 = vlaneseq
    %v343 = vshrl.u32 %v342, 7
    %v344 = vsub.s32 0, %v343
    %v345 = vrot.slane %v281, %v344
    %v347 = vadd.f32 %v333, %v345
    %v348 = vadd.f32 %v334, %v345
    %v349 = vadd.f32 %v335, %v345
    %v350 = vadd.f32 %v336, %v345
    %v351 = vadd.f32 %v337, %v345
    %v352 = vadd.f32 %v338, %v345
    %v353 = vadd.f32 %v339, %v345
    %v354 = vadd.f32 %v340, %v345
    %v355 = vmax.f32 %v347, 0.0
    %v356 = vmax.f32 %v348, 0.0
    %v357 = vmax.f32 %v349, 0.0
    %v358 = vmax.f32 %v350, 0.0
    %v359 = vmax.f32 %v351, 0.0
    %v360 = vmax.f32 %v352, 0.0
    %v361 = vmax.f32 %v353, 0.0
    %v362 = vmax.f32 %v354, 0.0
    %v363 = vpack.c.bf16 %v356, %v355
    %v364 = vpack.c.bf16 %v358, %v357
    %v365 = vpack.c.bf16 %v360, %v359
    %v366 = vpack.c.bf16 %v362, %v361
    %v367 = vld [vmem:[#allocation7] sm:$0xf]
    %v368 = vld [vmem:[#allocation7 + $0x4] sm:$0xf]
    %v369 = vld [vmem:[#allocation7 + $0x8] sm:$0xf]
    %v370 = vld [vmem:[#allocation7 + $0xc] sm:$0xf]
    %v371 = vld [vmem:[#allocation7 + $0x10] sm:$0xf]
    %v372 = vld [vmem:[#allocation7 + $0x14] sm:$0xf]
    %v373 = vld [vmem:[#allocation7 + $0x18] sm:$0xf]
    %v374 = vld [vmem:[#allocation7 + $0x1c] sm:$0xf]
    %v375 = vld [vmem:[#allocation7 + $0x20] sm:$0xf]
    %v376 = vld [vmem:[#allocation7 + $0x24] sm:$0xf]
    %v377 = vld [vmem:[#allocation7 + $0x28] sm:$0xf]
    %v378 = vld [vmem:[#allocation7 + $0x2c] sm:$0xf]
    %v379 = vld [vmem:[#allocation7 + $0x30] sm:$0xf]
    %v380 = vld [vmem:[#allocation7 + $0x34] sm:$0xf]
    %v381 = vld [vmem:[#allocation7 + $0x38] sm:$0xf]
    %v382 = vld [vmem:[#allocation7 + $0x3c] sm:$0xf]
    %v399 = vunpack.c.l.b16 %v367
    %v400 = vunpack.c.l.b16 %v368
    %v401 = vunpack.c.l.b16 %v369
    %v402 = vunpack.c.l.b16 %v370
    %v403 = vunpack.c.l.b16 %v371
    %v404 = vunpack.c.l.b16 %v372
    %v405 = vunpack.c.l.b16 %v373
    %v406 = vunpack.c.l.b16 %v374
    %v407 = vunpack.c.l.b16 %v375
    %v408 = vunpack.c.l.b16 %v376
    %v409 = vunpack.c.l.b16 %v377
    %v410 = vunpack.c.l.b16 %v378
    %v411 = vunpack.c.l.b16 %v379
    %v412 = vunpack.c.l.b16 %v380
    %v413 = vunpack.c.l.b16 %v381
    %v414 = vunpack.c.l.b16 %v382
    %v415 = vpack.c.b16 %v400, %v399
    %v416 = vpack.c.b16 %v402, %v401
    %v417 = vpack.c.b16 %v404, %v403
    %v418 = vpack.c.b16 %v406, %v405
    %v419 = vpack.c.b16 %v408, %v407
    %v420 = vpack.c.b16 %v410, %v409
    %v421 = vpack.c.b16 %v412, %v411
    %v422 = vpack.c.b16 %v414, %v413
    %431 = vmatprep.subr.bf16.mxu0 0
    %432 = vmatpush1.bf16.msra.mxu0 %v415
    %433 = vmatprep.subr.bf16.mxu0 0
    %434 = vmatpush1.bf16.msra.mxu0 %v416
    %435 = vmatprep.subr.bf16.mxu0 0
    %436 = vmatpush1.bf16.msra.mxu0 %v417
    %437 = vmatprep.subr.bf16.mxu0 0
    %438 = vmatpush1.bf16.msra.mxu0 %v418
    %439 = vmatprep.subr.bf16.mxu0 0
    %440 = vmatpush1.bf16.msra.mxu0 %v419
    %441 = vmatprep.subr.bf16.mxu0 0
    %442 = vmatpush1.bf16.msra.mxu0 %v420
    %443 = vmatprep.subr.bf16.mxu0 0
    %444 = vmatpush1.bf16.msra.mxu0 %v421
    %445 = vmatprep.subr.bf16.mxu0 0
    %446 = vmatpush1.bf16.msra.mxu0 %v422
    %447 = vmatprep.subr.bf16.mxu0 0
    %448 = vmatpush1.bf16.msra.mxu0 0
    %449 = vmatprep.subr.bf16.mxu0 0
    %450 = vmatpush1.bf16.msra.mxu0 0
    %451 = vmatprep.subr.bf16.mxu0 0
    %452 = vmatpush1.bf16.msra.mxu0 0
    %453 = vmatprep.subr.bf16.mxu0 0
    %454 = vmatpush1.bf16.msra.mxu0 0
    %455 = vmatprep.subr.bf16.mxu0 0
    %456 = vmatpush1.bf16.msra.mxu0 0
    %457 = vmatprep.subr.bf16.mxu0 0
    %458 = vmatpush1.bf16.msra.mxu0 0
    %459 = vmatprep.subr.bf16.mxu0 0
    %460 = vmatpush1.bf16.msra.mxu0 0
    %461 = vmatprep.subr.bf16.mxu0 0
    %462 = vmatpush1.bf16.msra.mxu0 0
    %463 = vmatprep.mubr.bf16.mxu0 0
    %464 = vmatmul.mubr.bf16.gmra.mrb[0].mxu0 %v363
    %v465 = vpop.f32.mrb[0].mxu0
    %v466 = vadd.f32 0.0, %v465
    %v467 = vpop.f32.mrb[0].mxu0
    %v468 = vpop.f32.mrb[0].mxu0
    %v469 = vadd.f32 0.0, %v468
    %v470 = vpop.f32.mrb[0].mxu0
    %471 = vmatprep.mubr.bf16.mxu0 0
    %472 = vmatmul.mubr.bf16.gmra.mrb[0].mxu0 %v364
    %v473 = vpop.f32.mrb[0].mxu0
    %v474 = vadd.f32 0.0, %v473
    %v475 = vpop.f32.mrb[0].mxu0
    %v476 = vpop.f32.mrb[0].mxu0
    %v477 = vadd.f32 0.0, %v476
    %v478 = vpop.f32.mrb[0].mxu0
    %479 = vmatprep.mubr.bf16.mxu0 0
    %480 = vmatmul.mubr.bf16.gmra.mrb[0].mxu0 %v365
    %v481 = vpop.f32.mrb[0].mxu0
    %v482 = vadd.f32 0.0, %v481
    %v483 = vpop.f32.mrb[0].mxu0
    %v484 = vpop.f32.mrb[0].mxu0
    %v485 = vadd.f32 0.0, %v484
    %v486 = vpop.f32.mrb[0].mxu0
    %487 = vmatprep.mubr.bf16.mxu0 0
    %488 = vmatmul.mubr.bf16.gmra.mrb[0].mxu0 %v366
    %v489 = vpop.f32.mrb[0].mxu0
    %v490 = vadd.f32 0.0, %v489
    %v491 = vpop.f32.mrb[0].mxu0
    %v492 = vpop.f32.mrb[0].mxu0
    %v493 = vadd.f32 0.0, %v492
    %v494 = vpop.f32.mrb[0].mxu0
    %495 = vdwg.mxu0
    %v496 = vadd.f32 %v466, %v469
    %v497 = vadd.f32 %v496, %v474
    %v498 = vadd.f32 %v497, %v477
    %v499 = vadd.f32 %v498, %v482
    %v500 = vadd.f32 %v499, %v485
    %v501 = vadd.f32 %v500, %v490
    %v502 = vadd.f32 %v501, %v493
    %v503 = vrot.slane %v502, 4
    %v504 = vadd.f32 %v502, %v503
    %v505 = vrot.slane %v504, 2
    %v506 = vadd.f32 %v504, %v505
    %v507 = vrot.slane %v506, 1
    %v508 = vadd.f32 %v506, %v507
    %v509 = vmul.f32 %v508, 0.015625
    %v510 = vsub.f32 %v466, %v509
    %v511 = vsub.f32 %v469, %v509
    %v512 = vsub.f32 %v474, %v509
    %v513 = vsub.f32 %v477, %v509
    %v514 = vsub.f32 %v482, %v509
    %v515 = vsub.f32 %v485, %v509
    %v516 = vsub.f32 %v490, %v509
    %v517 = vsub.f32 %v493, %v509
    %v518 = vmul.f32 %v510, %v510
    %v519 = vmul.f32 %v511, %v511
    %v520 = vmul.f32 %v512, %v512
    %v521 = vmul.f32 %v513, %v513
    %v522 = vmul.f32 %v514, %v514
    %v523 = vmul.f32 %v515, %v515
    %v524 = vmul.f32 %v516, %v516
    %v525 = vmul.f32 %v517, %v517
    %v526 = vadd.f32 %v518, %v519
    %v527 = vadd.f32 %v526, %v520
    %v528 = vadd.f32 %v527, %v521
    %v529 = vadd.f32 %v528, %v522
    %v530 = vadd.f32 %v529, %v523
    %v531 = vadd.f32 %v530, %v524
    %v532 = vadd.f32 %v531, %v525
    %v533 = vrot.slane %v532, 4
    %v534 = vadd.f32 %v532, %v533
    %v535 = vrot.slane %v534, 2
    %v536 = vadd.f32 %v534, %v535
    %v537 = vrot.slane %v536, 1
    %v538 = vadd.f32 %v536, %v537
    %v539 = vmul.f32 %v538, 0.015625
    %v540 = vadd.f32 %v539, 1e-05
    %v541 = vrsqrt.pop %v540
    %v542 = vmul.f32 %v510, %v541
    %v543 = vmul.f32 %v511, %v541
    %v544 = vmul.f32 %v512, %v541
    %v545 = vmul.f32 %v513, %v541
    %v546 = vmul.f32 %v514, %v541
    %v547 = vmul.f32 %v515, %v541
    %v548 = vmul.f32 %v516, %v541
    %v549 = vmul.f32 %v517, %v541
    %550 = vst [vmem:[#allocation8] sm:$0xff] %v542
    %551 = vst [vmem:[#allocation8 + $0x8] sm:$0xff] %v543
    %552 = vst [vmem:[#allocation8 + $0x10] sm:$0xff] %v544
    %553 = vst [vmem:[#allocation8 + $0x18] sm:$0xff] %v545
    %554 = vst [vmem:[#allocation8 + $0x20] sm:$0xff] %v546
    %555 = vst [vmem:[#allocation8 + $0x28] sm:$0xff] %v547
    %556 = vst [vmem:[#allocation8 + $0x30] sm:$0xff] %v548
    %557 = vst [vmem:[#allocation8 + $0x38] sm:$0xff] %v549
    // Predicated region
    $region34: #{tpu_custom_call.1} parent=1 // pred_check
      _
    $region35: #{tpu_custom_call.1} parent=1 // pred_check_branch
      %559 = sbr.rel (0) target = $region37
    $region36: #{tpu_custom_call.1} parent=1 // pred_region
      %s561 = ssub.s32 1024, 1024
      %562 = vsyncadd [#allocation4], %s561
      %s563 = sshll.u32 [#allocation8], 4
      %s564 = int_to_ptr.vmem [resolvable:$true] %s563
      %569 = dma.vmem_to_hbm [thread:$0]  %s564, 1024, %s5, [#allocation4], 128, 128, 8
    $region37: #{tpu_custom_call.1} parent=1 // pred_fallthru
      _
    // Predicated region
    $region38: #{tpu_custom_call.1} parent=1 // pred_check
      _
    $region39: #{tpu_custom_call.1} parent=1 // pred_check_branch
      %571 = sbr.rel (0) target = $region41
    $region40: #{tpu_custom_call.1} parent=1 // pred_region
      %572 = dma.done [#allocation4], 1024
    $region41: #{tpu_custom_call.1} parent=1 // pred_fallthru
      _
    %573 = vsyncpa [#allocation3], 1
    %574 = vsyncpa [#allocation6], 1
    %575 = vsyncpa [#allocation4], 1

</llo_original>
